<compile_context>
chip_gen: v7x
topology: tpu7x:2x2x1
jax: 0.10.0
libtpu: 0.0.40
codegen_flags: <defaults>
</compile_context>

<pallas_src>
import jax
import jax.numpy as jnp
from jax.experimental import pallas as pl
from jax.experimental.pallas import tpu as pltpu


# --------------------------------------------------------------------------
# helpers
# --------------------------------------------------------------------------
def _round_up(x, m):
    return ((x + m - 1) // m) * m


def _pad2(a, rows, cols):
    r, c = a.shape
    if r == rows and c == cols:
        return a
    return jnp.pad(a, ((0, rows - r), (0, cols - c)))


# --------------------------------------------------------------------------
# Kernel 1: tiled backbone GEMM   out = relu(x @ w + b)
# grid = (M_tiles, N_tiles, K_tiles);  K is the reduction ("arbitrary") axis.
# Inputs bf16, fp32 accumulator, bias+ReLU in the last-K epilogue.
# --------------------------------------------------------------------------
def _backbone_kernel(x_ref, w_ref, b_ref, o_ref, acc_ref):
    k = pl.program_id(2)

    @pl.when(k == 0)
    def _():
        acc_ref[...] = jnp.zeros_like(acc_ref)

    acc_ref[...] += jnp.dot(
        x_ref[...], w_ref[...], preferred_element_type=jnp.float32
    )

    @pl.when(k == pl.num_programs(2) - 1)
    def _():
        o_ref[...] = jnp.maximum(acc_ref[...] + b_ref[...], 0.0).astype(o_ref.dtype)


def backbone_linear_relu(x, w, b, *, tm=256, tn=256, tk=512,
                         out_dtype=jnp.bfloat16):
    """relu(x @ w + b) via a tiled Pallas TPU GEMM (bf16 MXU, fp32 accumulate)."""
    M, K = x.shape
    Kw, N = w.shape
    assert K == Kw and b.shape == (N,)

    tm_e = min(tm, _round_up(M, 8))
    tn_e = min(tn, _round_up(N, 128))
    tk_e = min(tk, _round_up(K, 128))
    Mp, Np, Kp = _round_up(M, tm_e), _round_up(N, tn_e), _round_up(K, tk_e)

    # Zero-pad tails (zeros are harmless in the fp32 accumulator).
    xp = _pad2(x.astype(jnp.bfloat16), Mp, Kp)
    wp = _pad2(w.astype(jnp.bfloat16), Kp, Np)
    bp = _pad2(b.astype(jnp.float32).reshape(1, N), 1, Np)

    grid = (Mp // tm_e, Np // tn_e, Kp // tk_e)
    out = pl.pallas_call(
        _backbone_kernel,
        out_shape=jax.ShapeDtypeStruct((Mp, Np), out_dtype),
        grid_spec=pltpu.PrefetchScalarGridSpec(
            num_scalar_prefetch=0,
            grid=grid,
            in_specs=[
                pl.BlockSpec((tm_e, tk_e), lambda i, j, k: (i, k)),  # x
                pl.BlockSpec((tk_e, tn_e), lambda i, j, k: (k, j)),  # w
                pl.BlockSpec((1, tn_e), lambda i, j, k: (0, j)),     # bias
            ],
            out_specs=pl.BlockSpec((tm_e, tn_e), lambda i, j, k: (i, j)),
            scratch_shapes=[pltpu.VMEM((tm_e, tn_e), jnp.float32)],
        ),
        compiler_params=pltpu.CompilerParams(
            dimension_semantics=("parallel", "parallel", "arbitrary"),
            vmem_limit_bytes=32 * 1024 * 1024,   # fits v7x's 64 MiB with headroom
        ),
    )(xp, wp, bp)
    return out[:M, :N]


# --------------------------------------------------------------------------
# Kernel 2: fused head.  All weights resident in VMEM, grid over M only.
#   f    = relu(feats @ Wfp + bfp)          (feat_proj -> 256, ReLU)
#   cls  = relu(f @ Wc0 + bc0) @ Wc1 + bc1  (classifier head)
#   disc = relu(f @ Wd0 + bd0) @ Wd1 + bd1  (discriminator head)
# Final weights are pre-padded to 128 output lanes (lane-dense stores).
# --------------------------------------------------------------------------
def _head_kernel(feat_ref, wfp_ref, bfp_ref,
                 wc0_ref, bc0_ref, wc1_ref, bc1_ref,
                 wd0_ref, bd0_ref, wd1_ref, bd1_ref,
                 cls_ref, disc_ref):
    x = feat_ref[...]                                             # (tm, F) bf16
    f = jnp.maximum(
        jnp.dot(x, wfp_ref[...], preferred_element_type=jnp.float32)
        + bfp_ref[...], 0.0).astype(jnp.bfloat16)                 # (tm, 256)

    hc = jnp.maximum(
        jnp.dot(f, wc0_ref[...], preferred_element_type=jnp.float32)
        + bc0_ref[...], 0.0).astype(jnp.bfloat16)                 # (tm, H)
    cls_ref[...] = (
        jnp.dot(hc, wc1_ref[...], preferred_element_type=jnp.float32)
        + bc1_ref[...]).astype(cls_ref.dtype)                     # (tm, 128)

    hd = jnp.maximum(
        jnp.dot(f, wd0_ref[...], preferred_element_type=jnp.float32)
        + bd0_ref[...], 0.0).astype(jnp.bfloat16)                 # (tm, H)
    disc_ref[...] = (
        jnp.dot(hd, wd1_ref[...], preferred_element_type=jnp.float32)
        + bd1_ref[...]).astype(disc_ref.dtype)                    # (tm, 128)


def fused_heads(feats, params, *, tm=256):
    """One pallas_call for feat_proj + classifier + discriminator heads."""
    B, F = feats.shape
    wfp, bfp = params["feat_proj"]
    wc0, bc0 = params["cls0"]
    wc1, bc1 = params["cls1"]
    wd0, bd0 = params["disc0"]
    wd1, bd1 = params["disc1"]
    H = wc0.shape[1]
    num_classes, num_domains = wc1.shape[1], wd1.shape[1]

    LANE = 128                                   # lane-dense output width
    NCp = _round_up(num_classes, LANE)
    NDp = _round_up(num_domains, LANE)

    tm_e = min(tm, _round_up(B, 8))
    Mp = _round_up(B, tm_e)
    fp = _pad2(feats.astype(jnp.bfloat16), Mp, F)

    wc1p = _pad2(wc1, H, NCp)
    bc1p = _pad2(bc1.astype(jnp.float32).reshape(1, -1), 1, NCp)
    wd1p = _pad2(wd1, H, NDp)
    bd1p = _pad2(bd1.astype(jnp.float32).reshape(1, -1), 1, NDp)
    bfp2 = bfp.astype(jnp.float32).reshape(1, -1)
    bc02 = bc0.astype(jnp.float32).reshape(1, -1)
    bd02 = bd0.astype(jnp.float32).reshape(1, -1)

    def full(a):  # whole array resident, same block every grid step
        return pl.BlockSpec(a.shape, lambda i: (0,) * a.ndim)

    cls_p, disc_p = pl.pallas_call(
        _head_kernel,
        out_shape=(jax.ShapeDtypeStruct((Mp, NCp), jnp.float32),
                   jax.ShapeDtypeStruct((Mp, NDp), jnp.float32)),
        grid_spec=pltpu.PrefetchScalarGridSpec(
            num_scalar_prefetch=0,
            grid=(Mp // tm_e,),
            in_specs=[
                pl.BlockSpec((tm_e, F), lambda i: (i, 0)),   # features (tiled in M)
                full(wfp), full(bfp2),
                full(wc0), full(bc02), full(wc1p), full(bc1p),
                full(wd0), full(bd02), full(wd1p), full(bd1p),
            ],
            out_specs=[
                pl.BlockSpec((tm_e, NCp), lambda i: (i, 0)),
                pl.BlockSpec((tm_e, NDp), lambda i: (i, 0)),
            ],
        ),
        compiler_params=pltpu.CompilerParams(
            dimension_semantics=("parallel",),
            vmem_limit_bytes=32 * 1024 * 1024,
        ),
    )(fp, wfp, bfp2, wc0, bc02, wc1p, bc1p, wd0, bd02, wd1p, bd1p)

    return cls_p[:B, :num_classes], disc_p[:B, :num_domains]


# --------------------------------------------------------------------------
# Parameter setup (deterministic, in-script).  Weights bf16, biases fp32.
# --------------------------------------------------------------------------
def _init_linear(key, fan_in, fan_out):
    kw, kb = jax.random.split(key)
    w = (jax.random.normal(kw, (fan_in, fan_out), jnp.float32)
         / jnp.sqrt(fan_in)).astype(jnp.bfloat16)
    b = jax.random.normal(kb, (fan_out,), jnp.float32) * 0.01
    return w, b


def init_params(key, in_chans, h, w, feat_size, hidden, num_classes, num_domains):
    keys = jax.random.split(key, 6)
    flat = in_chans * h * w
    return {
        # stand-in backbone (see TODO above)
        "backbone": _init_linear(keys[0], flat, feat_size),
        # nn.Linear(feat_size, 256) from the module's feature_extractor
        "feat_proj": _init_linear(keys[1], feat_size, 256),
        # classifier head: Linear(256, hidden) + ReLU, Linear(hidden, num_classes)
        "cls0": _init_linear(keys[2], 256, hidden),
        "cls1": _init_linear(keys[3], hidden, num_classes),
        # discriminator head: Linear(256, hidden) + ReLU, Linear(hidden, num_domains)
        "disc0": _init_linear(keys[4], 256, hidden),
        "disc1": _init_linear(keys[5], hidden, num_domains),
    }


# --------------------------------------------------------------------------
# AdversarialNetwork forward passes
# --------------------------------------------------------------------------
def forward_both(params, x_nchw):
    """Compute features ONCE and return (class_out, disc_out) from the fused head."""
    B = x_nchw.shape[0]
    x_flat = x_nchw.reshape(B, -1)                                   # glue
    feats = backbone_linear_relu(x_flat, *params["backbone"])        # backbone stand-in
    return fused_heads(feats, params)


def forward(params, x_nchw):
    """Classifier forward pass (== AdversarialNetwork.forward)."""
    return forward_both(params, x_nchw)[0]


def forward_disc(params, x_nchw):
    """Discriminator forward pass (== AdversarialNetwork.forward_disc)."""
    return forward_both(params, x_nchw)[1]


# --------------------------------------------------------------------------
# Pure-JAX reference (mimics the same bf16-matmul / fp32-accumulate numerics)
# --------------------------------------------------------------------------
def _ref_forward_both(params, x_nchw):
    B = x_nchw.shape[0]
    x = x_nchw.reshape(B, -1)

    def mm(a, wb):
        w, b = wb
        return jnp.dot(a.astype(jnp.bfloat16), w,
                       preferred_element_type=jnp.float32) + b

    feats = jnp.maximum(mm(x, params["backbone"]), 0.0).astype(jnp.bfloat16)
    f = jnp.maximum(mm(feats, params["feat_proj"]), 0.0).astype(jnp.bfloat16)
    hc = jnp.maximum(mm(f, params["cls0"]), 0.0).astype(jnp.bfloat16)
    cls = mm(hc, params["cls1"])
    hd = jnp.maximum(mm(f, params["disc0"]), 0.0).astype(jnp.bfloat16)
    disc = mm(hd, params["disc1"])
    return cls, disc


if __name__ == "__main__":
    # small shapes consistent with the module's forward
    B, C, H, W = 2, 1, 16, 16          # NCHW images, in_chans=1
    FEAT_SIZE = 256                    # scaled-down stand-in for feat_size=2048
    HIDDEN = 128
    NUM_CLASSES = 3
    NUM_DOMAINS = 2

    key = jax.random.PRNGKey(0)
    k_param, k_x = jax.random.split(key)
    params = init_params(k_param, C, H, W, FEAT_SIZE, HIDDEN,
                         NUM_CLASSES, NUM_DOMAINS)
    x = jax.random.normal(k_x, (B, C, H, W), jnp.float32)

    fwd_both = jax.jit(forward_both)
    class_out, disc_out = jax.block_until_ready(fwd_both(params, x))
    assert class_out.shape == (B, NUM_CLASSES)
    assert disc_out.shape == (B, NUM_DOMAINS)

    # API-parity single-output paths
    c2 = jax.block_until_ready(forward(params, x))
    d2 = jax.block_until_ready(forward_disc(params, x))

    ref_c, ref_d = _ref_forward_both(params, x)
    assert jnp.allclose(class_out, ref_c, atol=2e-2, rtol=2e-2)
    assert jnp.allclose(disc_out, ref_d, atol=2e-2, rtol=2e-2)
    assert jnp.allclose(c2, class_out) and jnp.allclose(d2, disc_out)

    print("KERNEL_OK")
</pallas_src>

<mosaic_0001>
module attributes {stable_mosaic.version = 11 : i64} {
  func.func @_backbone_kernel(%arg0: i32, %arg1: i32, %arg2: i32, %arg3: memref<8x256xbf16, #tpu.memory_space<vmem>>, %arg4: memref<256x256xbf16, #tpu.memory_space<vmem>>, %arg5: memref<1x256xf32, #tpu.memory_space<vmem>>, %arg6: memref<8x256xbf16, #tpu.memory_space<vmem>>, %arg7: memref<8x256xf32, #tpu.memory_space<vmem>>) attributes {dimension_semantics = [#tpu.dimension_semantics<parallel>, #tpu.dimension_semantics<parallel>, #tpu.dimension_semantics<arbitrary>], iteration_bounds = array<i64: 1, 1, 1>, scalar_prefetch = 0 : i64, scratch_operands = 1 : i64, tpu.core_type = #tpu.core_type<tc>, window_params = [{transform_indices = @transform_0, window_bounds = array<i64: 8, 256>}, {transform_indices = @transform_1, window_bounds = array<i64: 256, 256>}, {transform_indices = @transform_2, window_bounds = array<i64: 1, 256>}, {transform_indices = @transform_3, window_bounds = array<i64: 8, 256>}]} {
    %c0_i32 = arith.constant 0 : i32
    %0 = arith.cmpi eq, %arg2, %c0_i32 : i32
    %1 = arith.extui %0 : i1 to i32
    %c0_i32_0 = arith.constant 0 : i32
    %2 = arith.cmpi ne, %1, %c0_i32_0 : i32
    scf.if %2 {
      %cst_10 = arith.constant 0.000000e+00 : f32
      %12 = vector.broadcast %cst_10 : f32 to vector<8x256xf32>
      %c0_11 = arith.constant 0 : index
      %c0_12 = arith.constant 0 : index
      %13 = vector.load %arg7[%c0_11, %c0_12] : memref<8x256xf32, #tpu.memory_space<vmem>>, vector<8x256xf32>
      tpu.vector_store %arg7[%c0_11, %c0_12], %12 {strides = array<i32>} : memref<8x256xf32, #tpu.memory_space<vmem>>, vector<8x256xf32>,
    } else {
    }
    %c0 = arith.constant 0 : index
    %c0_1 = arith.constant 0 : index
    %3 = vector.load %arg7[%c0, %c0_1] : memref<8x256xf32, #tpu.memory_space<vmem>>, vector<8x256xf32>
    %c0_2 = arith.constant 0 : index
    %c0_3 = arith.constant 0 : index
    %4 = vector.load %arg3[%c0_2, %c0_3] : memref<8x256xbf16, #tpu.memory_space<vmem>>, vector<8x256xbf16>
    %c0_4 = arith.constant 0 : index
    %c0_5 = arith.constant 0 : index
    %5 = vector.load %arg4[%c0_4, %c0_5] : memref<256x256xbf16, #tpu.memory_space<vmem>>, vector<256x256xbf16>
    %cst = arith.constant dense<0.000000e+00> : vector<8x256xf32>
    %6 = tpu.matmul %4, %5, %cst {dimension_numbers = #tpu.dot_dimension_numbers<[1], [0], [0], [1], [0, 0, 1, 1], [], []>} : vector<8x256xbf16>, vector<256x256xbf16>, vector<8x256xf32> -> vector<8x256xf32>
    %7 = arith.addf %3, %6 : vector<8x256xf32>
    %c0_6 = arith.constant 0 : index
    %c0_7 = arith.constant 0 : index
    %8 = vector.load %arg7[%c0_6, %c0_7] : memref<8x256xf32, #tpu.memory_space<vmem>>, vector<8x256xf32>
    tpu.vector_store %arg7[%c0_6, %c0_7], %7 {strides = array<i32>} : memref<8x256xf32, #tpu.memory_space<vmem>>, vector<8x256xf32>,
    %c0_i32_8 = arith.constant 0 : i32
    %9 = arith.cmpi eq, %arg2, %c0_i32_8 : i32
    %10 = arith.extui %9 : i1 to i32
    %c0_i32_9 = arith.constant 0 : i32
    %11 = arith.cmpi ne, %10, %c0_i32_9 : i32
    scf.if %11 {
      %c0_10 = arith.constant 0 : index
      %c0_11 = arith.constant 0 : index
      %12 = vector.load %arg7[%c0_10, %c0_11] : memref<8x256xf32, #tpu.memory_space<vmem>>, vector<8x256xf32>
      %c0_12 = arith.constant 0 : index
      %c0_13 = arith.constant 0 : index
      %13 = vector.load %arg5[%c0_12, %c0_13] : memref<1x256xf32, #tpu.memory_space<vmem>>, vector<1x256xf32>
      %14 = vector.broadcast %13 : vector<1x256xf32> to vector<8x256xf32>
      %15 = arith.addf %12, %14 : vector<8x256xf32>
      %cst_14 = arith.constant 0.000000e+00 : f32
      %16 = vector.broadcast %cst_14 : f32 to vector<8x256xf32>
      %17 = arith.maximumf %15, %16 : vector<8x256xf32>
      %18 = arith.truncf %17 : vector<8x256xf32> to vector<8x256xbf16>
      %c0_15 = arith.constant 0 : index
      %c0_16 = arith.constant 0 : index
      %19 = vector.load %arg6[%c0_15, %c0_16] : memref<8x256xbf16, #tpu.memory_space<vmem>>, vector<8x256xbf16>
      tpu.vector_store %arg6[%c0_15, %c0_16], %18 {strides = array<i32>} : memref<8x256xbf16, #tpu.memory_space<vmem>>, vector<8x256xbf16>,
    } else {
    }
    return
  }
  func.func @transform_0(%arg0: i32, %arg1: i32, %arg2: i32) -> (i32, i32) {
    %c0_i32 = arith.constant 0 : i32
    return %arg0, %arg2 : i32, i32
  }
  func.func @transform_1(%arg0: i32, %arg1: i32, %arg2: i32) -> (i32, i32) {
    %c0_i32 = arith.constant 0 : i32
    return %arg2, %arg1 : i32, i32
  }
  func.func @transform_2(%arg0: i32, %arg1: i32, %arg2: i32) -> (i32, i32) {
    %c0_i32 = arith.constant 0 : i32
    %c0_i32_0 = arith.constant 0 : i32
    return %c0_i32, %arg1 : i32, i32
  }
  func.func @transform_3(%arg0: i32, %arg1: i32, %arg2: i32) -> (i32, i32) {
    %c0_i32 = arith.constant 0 : i32
    return %arg0, %arg1 : i32, i32
  }
}

module attributes {stable_mosaic.version = 11 : i64} {
  func.func @_head_kernel(%arg0: i32, %arg1: memref<8x256xbf16, #tpu.memory_space<vmem>>, %arg2: memref<256x256xbf16, #tpu.memory_space<vmem>>, %arg3: memref<1x256xf32, #tpu.memory_space<vmem>>, %arg4: memref<256x128xbf16, #tpu.memory_space<vmem>>, %arg5: memref<1x128xf32, #tpu.memory_space<vmem>>, %arg6: memref<128x128xbf16, #tpu.memory_space<vmem>>, %arg7: memref<1x128xf32, #tpu.memory_space<vmem>>, %arg8: memref<256x128xbf16, #tpu.memory_space<vmem>>, %arg9: memref<1x128xf32, #tpu.memory_space<vmem>>, %arg10: memref<128x128xbf16, #tpu.memory_space<vmem>>, %arg11: memref<1x128xf32, #tpu.memory_space<vmem>>, %arg12: memref<8x128xf32, #tpu.memory_space<vmem>>, %arg13: memref<8x128xf32, #tpu.memory_space<vmem>>) attributes {dimension_semantics = [#tpu.dimension_semantics<parallel>], iteration_bounds = array<i64: 1>, scalar_prefetch = 0 : i64, scratch_operands = 0 : i64, tpu.core_type = #tpu.core_type<tc>, window_params = [{transform_indices = @transform_0, window_bounds = array<i64: 8, 256>}, {pipeline_mode = #tpu.pipeline_mode<synchronous>, transform_indices = @transform_1, window_bounds = array<i64: 256, 256>}, {pipeline_mode = #tpu.pipeline_mode<synchronous>, transform_indices = @transform_2, window_bounds = array<i64: 1, 256>}, {pipeline_mode = #tpu.pipeline_mode<synchronous>, transform_indices = @transform_3, window_bounds = array<i64: 256, 128>}, {pipeline_mode = #tpu.pipeline_mode<synchronous>, transform_indices = @transform_4, window_bounds = array<i64: 1, 128>}, {pipeline_mode = #tpu.pipeline_mode<synchronous>, transform_indices = @transform_5, window_bounds = array<i64: 128, 128>}, {pipeline_mode = #tpu.pipeline_mode<synchronous>, transform_indices = @transform_6, window_bounds = array<i64: 1, 128>}, {pipeline_mode = #tpu.pipeline_mode<synchronous>, transform_indices = @transform_7, window_bounds = array<i64: 256, 128>}, {pipeline_mode = #tpu.pipeline_mode<synchronous>, transform_indices = @transform_8, window_bounds = array<i64: 1, 128>}, {pipeline_mode = #tpu.pipeline_mode<synchronous>, transform_indices = @transform_9, window_bounds = array<i64: 128, 128>}, {pipeline_mode = #tpu.pipeline_mode<synchronous>, transform_indices = @transform_10, window_bounds = array<i64: 1, 128>}, {transform_indices = @transform_11, window_bounds = array<i64: 8, 128>}, {transform_indices = @transform_12, window_bounds = array<i64: 8, 128>}]} {
    %c0 = arith.constant 0 : index
    %c0_0 = arith.constant 0 : index
    %0 = vector.load %arg1[%c0, %c0_0] : memref<8x256xbf16, #tpu.memory_space<vmem>>, vector<8x256xbf16>
    %c0_1 = arith.constant 0 : index
    %c0_2 = arith.constant 0 : index
    %1 = vector.load %arg2[%c0_1, %c0_2] : memref<256x256xbf16, #tpu.memory_space<vmem>>, vector<256x256xbf16>
    %cst = arith.constant dense<0.000000e+00> : vector<8x256xf32>
    %2 = tpu.matmul %0, %1, %cst {dimension_numbers = #tpu.dot_dimension_numbers<[1], [0], [0], [1], [0, 0, 1, 1], [], []>} : vector<8x256xbf16>, vector<256x256xbf16>, vector<8x256xf32> -> vector<8x256xf32>
    %c0_3 = arith.constant 0 : index
    %c0_4 = arith.constant 0 : index
    %3 = vector.load %arg3[%c0_3, %c0_4] : memref<1x256xf32, #tpu.memory_space<vmem>>, vector<1x256xf32>
    %4 = vector.broadcast %3 : vector<1x256xf32> to vector<8x256xf32>
    %5 = arith.addf %2, %4 : vector<8x256xf32>
    %cst_5 = arith.constant 0.000000e+00 : f32
    %6 = vector.broadcast %cst_5 : f32 to vector<8x256xf32>
    %7 = arith.maximumf %5, %6 : vector<8x256xf32>
    %8 = arith.truncf %7 : vector<8x256xf32> to vector<8x256xbf16>
    %c0_6 = arith.constant 0 : index
    %c0_7 = arith.constant 0 : index
    %9 = vector.load %arg4[%c0_6, %c0_7] : memref<256x128xbf16, #tpu.memory_space<vmem>>, vector<256x128xbf16>
    %cst_8 = arith.constant dense<0.000000e+00> : vector<8x128xf32>
    %10 = tpu.matmul %8, %9, %cst_8 {dimension_numbers = #tpu.dot_dimension_numbers<[1], [0], [0], [1], [0, 0, 1, 1], [], []>} : vector<8x256xbf16>, vector<256x128xbf16>, vector<8x128xf32> -> vector<8x128xf32>
    %c0_9 = arith.constant 0 : index
    %c0_10 = arith.constant 0 : index
    %11 = vector.load %arg5[%c0_9, %c0_10] : memref<1x128xf32, #tpu.memory_space<vmem>>, vector<1x128xf32>
    %12 = vector.broadcast %11 : vector<1x128xf32> to vector<8x128xf32>
    %13 = arith.addf %10, %12 : vector<8x128xf32>
    %cst_11 = arith.constant 0.000000e+00 : f32
    %14 = vector.broadcast %cst_11 : f32 to vector<8x128xf32>
    %15 = arith.maximumf %13, %14 : vector<8x128xf32>
    %16 = arith.truncf %15 : vector<8x128xf32> to vector<8x128xbf16>
    %c0_12 = arith.constant 0 : index
    %c0_13 = arith.constant 0 : index
    %17 = vector.load %arg6[%c0_12, %c0_13] : memref<128x128xbf16, #tpu.memory_space<vmem>>, vector<128x128xbf16>
    %cst_14 = arith.constant dense<0.000000e+00> : vector<8x128xf32>
    %18 = tpu.matmul %16, %17, %cst_14 {dimension_numbers = #tpu.dot_dimension_numbers<[1], [0], [0], [1], [0, 0, 1, 1], [], []>} : vector<8x128xbf16>, vector<128x128xbf16>, vector<8x128xf32> -> vector<8x128xf32>
    %c0_15 = arith.constant 0 : index
    %c0_16 = arith.constant 0 : index
    %19 = vector.load %arg7[%c0_15, %c0_16] : memref<1x128xf32, #tpu.memory_space<vmem>>, vector<1x128xf32>
    %20 = vector.broadcast %19 : vector<1x128xf32> to vector<8x128xf32>
    %21 = arith.addf %18, %20 : vector<8x128xf32>
    %c0_17 = arith.constant 0 : index
    %c0_18 = arith.constant 0 : index
    %22 = vector.load %arg12[%c0_17, %c0_18] : memref<8x128xf32, #tpu.memory_space<vmem>>, vector<8x128xf32>
    tpu.vector_store %arg12[%c0_17, %c0_18], %21 {strides = array<i32>} : memref<8x128xf32, #tpu.memory_space<vmem>>, vector<8x128xf32>,
    %c0_19 = arith.constant 0 : index
    %c0_20 = arith.constant 0 : index
    %23 = vector.load %arg8[%c0_19, %c0_20] : memref<256x128xbf16, #tpu.memory_space<vmem>>, vector<256x128xbf16>
    %cst_21 = arith.constant dense<0.000000e+00> : vector<8x128xf32>
    %24 = tpu.matmul %8, %23, %cst_21 {dimension_numbers = #tpu.dot_dimension_numbers<[1], [0], [0], [1], [0, 0, 1, 1], [], []>} : vector<8x256xbf16>, vector<256x128xbf16>, vector<8x128xf32> -> vector<8x128xf32>
    %c0_22 = arith.constant 0 : index
    %c0_23 = arith.constant 0 : index
    %25 = vector.load %arg9[%c0_22, %c0_23] : memref<1x128xf32, #tpu.memory_space<vmem>>, vector<1x128xf32>
    %26 = vector.broadcast %25 : vector<1x128xf32> to vector<8x128xf32>
    %27 = arith.addf %24, %26 : vector<8x128xf32>
    %cst_24 = arith.constant 0.000000e+00 : f32
    %28 = vector.broadcast %cst_24 : f32 to vector<8x128xf32>
    %29 = arith.maximumf %27, %28 : vector<8x128xf32>
    %30 = arith.truncf %29 : vector<8x128xf32> to vector<8x128xbf16>
    %c0_25 = arith.constant 0 : index
    %c0_26 = arith.constant 0 : index
    %31 = vector.load %arg10[%c0_25, %c0_26] : memref<128x128xbf16, #tpu.memory_space<vmem>>, vector<128x128xbf16>
    %cst_27 = arith.constant dense<0.000000e+00> : vector<8x128xf32>
    %32 = tpu.matmul %30, %31, %cst_27 {dimension_numbers = #tpu.dot_dimension_numbers<[1], [0], [0], [1], [0, 0, 1, 1], [], []>} : vector<8x128xbf16>, vector<128x128xbf16>, vector<8x128xf32> -> vector<8x128xf32>
    %c0_28 = arith.constant 0 : index
    %c0_29 = arith.constant 0 : index
    %33 = vector.load %arg11[%c0_28, %c0_29] : memref<1x128xf32, #tpu.memory_space<vmem>>, vector<1x128xf32>
    %34 = vector.broadcast %33 : vector<1x128xf32> to vector<8x128xf32>
    %35 = arith.addf %32, %34 : vector<8x128xf32>
    %c0_30 = arith.constant 0 : index
    %c0_31 = arith.constant 0 : index
    %36 = vector.load %arg13[%c0_30, %c0_31] : memref<8x128xf32, #tpu.memory_space<vmem>>, vector<8x128xf32>
    tpu.vector_store %arg13[%c0_30, %c0_31], %35 {strides = array<i32>} : memref<8x128xf32, #tpu.memory_space<vmem>>, vector<8x128xf32>,
    return
  }
  func.func @transform_0(%arg0: i32) -> (i32, i32) {
    %c0_i32 = arith.constant 0 : i32
    %c0_i32_0 = arith.constant 0 : i32
    return %arg0, %c0_i32 : i32, i32
  }
  func.func @transform_1(%arg0: i32) -> (i32, i32) {
    %c0_i32 = arith.constant 0 : i32
    %c0_i32_0 = arith.constant 0 : i32
    %c0_i32_1 = arith.constant 0 : i32
    return %c0_i32, %c0_i32_0 : i32, i32
  }
  func.func @transform_2(%arg0: i32) -> (i32, i32) {
    %c0_i32 = arith.constant 0 : i32
    %c0_i32_0 = arith.constant 0 : i32
    %c0_i32_1 = arith.constant 0 : i32
    return %c0_i32, %c0_i32_0 : i32, i32
  }
  func.func @transform_3(%arg0: i32) -> (i32, i32) {
    %c0_i32 = arith.constant 0 : i32
    %c0_i32_0 = arith.constant 0 : i32
    %c0_i32_1 = arith.constant 0 : i32
    return %c0_i32, %c0_i32_0 : i32, i32
  }
  func.func @transform_4(%arg0: i32) -> (i32, i32) {
    %c0_i32 = arith.constant 0 : i32
    %c0_i32_0 = arith.constant 0 : i32
    %c0_i32_1 = arith.constant 0 : i32
    return %c0_i32, %c0_i32_0 : i32, i32
  }
  func.func @transform_5(%arg0: i32) -> (i32, i32) {
    %c0_i32 = arith.constant 0 : i32
    %c0_i32_0 = arith.constant 0 : i32
    %c0_i32_1 = arith.constant 0 : i32
    return %c0_i32, %c0_i32_0 : i32, i32
  }
  func.func @transform_6(%arg0: i32) -> (i32, i32) {
    %c0_i32 = arith.constant 0 : i32
    %c0_i32_0 = arith.constant 0 : i32
    %c0_i32_1 = arith.constant 0 : i32
    return %c0_i32, %c0_i32_0 : i32, i32
  }
  func.func @transform_7(%arg0: i32) -> (i32, i32) {
    %c0_i32 = arith.constant 0 : i32
    %c0_i32_0 = arith.constant 0 : i32
    %c0_i32_1 = arith.constant 0 : i32
    return %c0_i32, %c0_i32_0 : i32, i32
  }
  func.func @transform_8(%arg0: i32) -> (i32, i32) {
    %c0_i32 = arith.constant 0 : i32
    %c0_i32_0 = arith.constant 0 : i32
    %c0_i32_1 = arith.constant 0 : i32
    return %c0_i32, %c0_i32_0 : i32, i32
  }
  func.func @transform_9(%arg0: i32) -> (i32, i32) {
    %c0_i32 = arith.constant 0 : i32
    %c0_i32_0 = arith.constant 0 : i32
    %c0_i32_1 = arith.constant 0 : i32
    return %c0_i32, %c0_i32_0 : i32, i32
  }
  func.func @transform_10(%arg0: i32) -> (i32, i32) {
    %c0_i32 = arith.constant 0 : i32
    %c0_i32_0 = arith.constant 0 : i32
    %c0_i32_1 = arith.constant 0 : i32
    return %c0_i32, %c0_i32_0 : i32, i32
  }
  func.func @transform_11(%arg0: i32) -> (i32, i32) {
    %c0_i32 = arith.constant 0 : i32
    %c0_i32_0 = arith.constant 0 : i32
    return %arg0, %c0_i32 : i32, i32
  }
  func.func @transform_12(%arg0: i32) -> (i32, i32) {
    %c0_i32 = arith.constant 0 : i32
    %c0_i32_0 = arith.constant 0 : i32
    return %arg0, %c0_i32 : i32, i32
  }
}

</mosaic_0001>

<llo_original>
// kernel: forward_both.2
$region0: #{forward_both.2}
  #allocation0 [shape = 'u32[]', space=smem, size = 0x4, offset = 0x4, fixed_abs, tag = 'smem constant byte address 0x4 - core index']
  #allocation1 [shape = 'u32[144,128]{1,0:T(1,128)}', space=vmem, size = 0x12000, scoped, tag = 'internal scratch']
  #allocation2 [shape = 'f32[8,256]{1,0:T(8,128)}', space=vmem, size = 0x2000, scoped, tag = 'scratch operand']
  %s0 = inlined_call_operand.vmem [shape: bf16[8,256], index: 0, kind: input, shape index: {}]
  %s1 = inlined_call_operand.vmem [shape: bf16[256,256], index: 1, kind: input, shape index: {}]
  %s2 = inlined_call_operand.vmem [shape: f32[1,256], index: 2, kind: input, shape index: {}]
  %s3 = inlined_call_operand.vmem [shape: bf16[8,256], index: 3, kind: output, shape index: {}]
  %s4 = sld [smem:[#allocation0]]
  $region30: #{forward_both.2} parent=0
    _
  %s6 = ssub.s32 1, %s4
  %s7 = scalar_select 0, %s6, %s4
  // Predicated region
  $region2: #{forward_both.2} parent=0 // pred_check
    _
  $region3: #{forward_both.2} parent=0 // pred_check_branch
    %9 = sbr.rel (0) target = $region5
  $region4: #{forward_both.2} parent=0 // pred_region
    _
  $region5: #{forward_both.2} parent=0 // pred_fallthru
    _
  // Predicated region
  $region6: #{forward_both.2} parent=0 // pred_check
    _
  $region7: #{forward_both.2} parent=0 // pred_check_branch
    %11 = sbr.rel (0) target = $region9
  $region8: #{forward_both.2} parent=0 // pred_region
    _
  $region9: #{forward_both.2} parent=0 // pred_fallthru
    _
  // Predicated region
  $region10: #{forward_both.2} parent=0 // pred_check
    _
  $region11: #{forward_both.2} parent=0 // pred_check_branch
    %13 = sbr.rel (0) target = $region13
  $region12: #{forward_both.2} parent=0 // pred_region
    _
  $region13: #{forward_both.2} parent=0 // pred_fallthru
    _
  %p14 = scmp.eq.s32.totalorder 0, 0
  // Predicated region
  $region14: #{forward_both.2} parent=0 // pred_check
    %p15 = pneg %p14
  $region15: #{forward_both.2} parent=0 // pred_check_branch
    %17 = sbr.rel (%p15) target = $region17
  $region16: #{forward_both.2} parent=0 // pred_region
    %18 = vst [vmem:[#allocation2] sm:$0xff] 0.0
    %19 = vst [vmem:[#allocation2 + $0x8] sm:$0xff] 0.0
  $region17: #{forward_both.2} parent=0 // pred_fallthru
    _
  %v20 = vld [vmem:[#allocation2] sm:$0xff]
  %v21 = vld [vmem:[#allocation2 + $0x8] sm:$0xff]
  %v22 = vld [vmem:[%s0] sm:$0xff]
  %v23 = vld [vmem:[%s1] sm:$0xff]
  %v24 = vld [vmem:[%s1 + $0x8] sm:$0xff]
  %v25 = vld [vmem:[%s1 + $0x10] sm:$0xff]
  %v26 = vld [vmem:[%s1 + $0x18] sm:$0xff]
  %v27 = vld [vmem:[%s1 + $0x20] sm:$0xff]
  %v28 = vld [vmem:[%s1 + $0x28] sm:$0xff]
  %v29 = vld [vmem:[%s1 + $0x30] sm:$0xff]
  %v30 = vld [vmem:[%s1 + $0x38] sm:$0xff]
  %v31 = vld [vmem:[%s1 + $0x40] sm:$0xff]
  %v32 = vld [vmem:[%s1 + $0x48] sm:$0xff]
  %v33 = vld [vmem:[%s1 + $0x50] sm:$0xff]
  %v34 = vld [vmem:[%s1 + $0x58] sm:$0xff]
  %v35 = vld [vmem:[%s1 + $0x60] sm:$0xff]
  %v36 = vld [vmem:[%s1 + $0x68] sm:$0xff]
  %v37 = vld [vmem:[%s1 + $0x70] sm:$0xff]
  %v38 = vld [vmem:[%s1 + $0x78] sm:$0xff]
  %v39 = vld [vmem:[%s1 + $0x80] sm:$0xff]
  %v40 = vld [vmem:[%s1 + $0x88] sm:$0xff]
  %v41 = vld [vmem:[%s1 + $0x90] sm:$0xff]
  %v42 = vld [vmem:[%s1 + $0x98] sm:$0xff]
  %v43 = vld [vmem:[%s1 + $0xa0] sm:$0xff]
  %v44 = vld [vmem:[%s1 + $0xa8] sm:$0xff]
  %v45 = vld [vmem:[%s1 + $0xb0] sm:$0xff]
  %v46 = vld [vmem:[%s1 + $0xb8] sm:$0xff]
  %v47 = vld [vmem:[%s1 + $0xc0] sm:$0xff]
  %v48 = vld [vmem:[%s1 + $0xc8] sm:$0xff]
  %v49 = vld [vmem:[%s1 + $0xd0] sm:$0xff]
  %v50 = vld [vmem:[%s1 + $0xd8] sm:$0xff]
  %v51 = vld [vmem:[%s1 + $0xe0] sm:$0xff]
  %v52 = vld [vmem:[%s1 + $0xe8] sm:$0xff]
  %v53 = vld [vmem:[%s1 + $0xf0] sm:$0xff]
  %v54 = vld [vmem:[%s1 + $0xf8] sm:$0xff]
  %v56 = vunpack.c.l.b16 %v22
  %v57 = vunpack.c.h.b16 %v22
  %v58 = vpack.c.b16 %v56, %v56
  %v59 = vpack.c.b16 %v57, %v57
  %v94 = vunpack.c.l.b16 %v23
  %v95 = vunpack.c.h.b16 %v23
  %v96 = vunpack.c.l.b16 %v24
  %v97 = vunpack.c.h.b16 %v24
  %v98 = vunpack.c.l.b16 %v25
  %v99 = vunpack.c.h.b16 %v25
  %v100 = vunpack.c.l.b16 %v26
  %v101 = vunpack.c.h.b16 %v26
  %v102 = vunpack.c.l.b16 %v27
  %v103 = vunpack.c.h.b16 %v27
  %v104 = vunpack.c.l.b16 %v28
  %v105 = vunpack.c.h.b16 %v28
  %v106 = vunpack.c.l.b16 %v29
  %v107 = vunpack.c.h.b16 %v29
  %v108 = vunpack.c.l.b16 %v30
  %v109 = vunpack.c.h.b16 %v30
  %v110 = vunpack.c.l.b16 %v31
  %v111 = vunpack.c.h.b16 %v31
  %v112 = vunpack.c.l.b16 %v32
  %v113 = vunpack.c.h.b16 %v32
  %v114 = vunpack.c.l.b16 %v33
  %v115 = vunpack.c.h.b16 %v33
  %v116 = vunpack.c.l.b16 %v34
  %v117 = vunpack.c.h.b16 %v34
  %v118 = vunpack.c.l.b16 %v35
  %v119 = vunpack.c.h.b16 %v35
  %v120 = vunpack.c.l.b16 %v36
  %v121 = vunpack.c.h.b16 %v36
  %v122 = vunpack.c.l.b16 %v37
  %v123 = vunpack.c.h.b16 %v37
  %v124 = vunpack.c.l.b16 %v38
  %v125 = vunpack.c.h.b16 %v38
  %v126 = vunpack.c.l.b16 %v39
  %v127 = vunpack.c.h.b16 %v39
  %v128 = vunpack.c.l.b16 %v40
  %v129 = vunpack.c.h.b16 %v40
  %v130 = vunpack.c.l.b16 %v41
  %v131 = vunpack.c.h.b16 %v41
  %v132 = vunpack.c.l.b16 %v42
  %v133 = vunpack.c.h.b16 %v42
  %v134 = vunpack.c.l.b16 %v43
  %v135 = vunpack.c.h.b16 %v43
  %v136 = vunpack.c.l.b16 %v44
  %v137 = vunpack.c.h.b16 %v44
  %v138 = vunpack.c.l.b16 %v45
  %v139 = vunpack.c.h.b16 %v45
  %v140 = vunpack.c.l.b16 %v46
  %v141 = vunpack.c.h.b16 %v46
  %v142 = vunpack.c.l.b16 %v47
  %v143 = vunpack.c.h.b16 %v47
  %v144 = vunpack.c.l.b16 %v48
  %v145 = vunpack.c.h.b16 %v48
  %v146 = vunpack.c.l.b16 %v49
  %v147 = vunpack.c.h.b16 %v49
  %v148 = vunpack.c.l.b16 %v50
  %v149 = vunpack.c.h.b16 %v50
  %v150 = vunpack.c.l.b16 %v51
  %v151 = vunpack.c.h.b16 %v51
  %v152 = vunpack.c.l.b16 %v52
  %v153 = vunpack.c.h.b16 %v52
  %v154 = vunpack.c.l.b16 %v53
  %v155 = vunpack.c.h.b16 %v53
  %v156 = vunpack.c.l.b16 %v54
  %v157 = vunpack.c.h.b16 %v54
  %v158 = vpack.c.b16 %v96, %v94
  %v159 = vpack.c.b16 %v97, %v95
  %v160 = vpack.c.b16 %v100, %v98
  %v161 = vpack.c.b16 %v101, %v99
  %v162 = vpack.c.b16 %v104, %v102
  %v163 = vpack.c.b16 %v105, %v103
  %v164 = vpack.c.b16 %v108, %v106
  %v165 = vpack.c.b16 %v109, %v107
  %v166 = vpack.c.b16 %v112, %v110
  %v167 = vpack.c.b16 %v113, %v111
  %v168 = vpack.c.b16 %v116, %v114
  %v169 = vpack.c.b16 %v117, %v115
  %v170 = vpack.c.b16 %v120, %v118
  %v171 = vpack.c.b16 %v121, %v119
  %v172 = vpack.c.b16 %v124, %v122
  %v173 = vpack.c.b16 %v125, %v123
  %v174 = vpack.c.b16 %v128, %v126
  %v175 = vpack.c.b16 %v129, %v127
  %v176 = vpack.c.b16 %v132, %v130
  %v177 = vpack.c.b16 %v133, %v131
  %v178 = vpack.c.b16 %v136, %v134
  %v179 = vpack.c.b16 %v137, %v135
  %v180 = vpack.c.b16 %v140, %v138
  %v181 = vpack.c.b16 %v141, %v139
  %v182 = vpack.c.b16 %v144, %v142
  %v183 = vpack.c.b16 %v145, %v143
  %v184 = vpack.c.b16 %v148, %v146
  %v185 = vpack.c.b16 %v149, %v147
  %v186 = vpack.c.b16 %v152, %v150
  %v187 = vpack.c.b16 %v153, %v151
  %v188 = vpack.c.b16 %v156, %v154
  %v189 = vpack.c.b16 %v157, %v155
  %222 = vmatprep.subr.bf16.mxu0 %v159
  %223 = vmatpush1.bf16.msra.mxu0 %v158
  %224 = vmatprep.subr.bf16.mxu0 %v161
  %225 = vmatpush1.bf16.msra.mxu0 %v160
  %226 = vmatprep.subr.bf16.mxu0 %v163
  %227 = vmatpush1.bf16.msra.mxu0 %v162
  %228 = vmatprep.subr.bf16.mxu0 %v165
  %229 = vmatpush1.bf16.msra.mxu0 %v164
  %230 = vmatprep.subr.bf16.mxu0 %v167
  %231 = vmatpush1.bf16.msra.mxu0 %v166
  %232 = vmatprep.subr.bf16.mxu0 %v169
  %233 = vmatpush1.bf16.msra.mxu0 %v168
  %234 = vmatprep.subr.bf16.mxu0 %v171
  %235 = vmatpush1.bf16.msra.mxu0 %v170
  %236 = vmatprep.subr.bf16.mxu0 %v173
  %237 = vmatpush1.bf16.msra.mxu0 %v172
  %238 = vmatprep.subr.bf16.mxu0 %v175
  %239 = vmatpush1.bf16.msra.mxu0 %v174
  %240 = vmatprep.subr.bf16.mxu0 %v177
  %241 = vmatpush1.bf16.msra.mxu0 %v176
  %242 = vmatprep.subr.bf16.mxu0 %v179
  %243 = vmatpush1.bf16.msra.mxu0 %v178
  %244 = vmatprep.subr.bf16.mxu0 %v181
  %245 = vmatpush1.bf16.msra.mxu0 %v180
  %246 = vmatprep.subr.bf16.mxu0 %v183
  %247 = vmatpush1.bf16.msra.mxu0 %v182
  %248 = vmatprep.subr.bf16.mxu0 %v185
  %249 = vmatpush1.bf16.msra.mxu0 %v184
  %250 = vmatprep.subr.bf16.mxu0 %v187
  %251 = vmatpush1.bf16.msra.mxu0 %v186
  %252 = vmatprep.subr.bf16.mxu0 %v189
  %253 = vmatpush1.bf16.msra.mxu0 %v188
  %254 = vmatprep.mubr.bf16.mxu0 %v59
  %255 = vmatmul.mubr.bf16.gmra.mrb[0].mxu0 %v58
  %v256 = vpop.f32.mrb[0].mxu0
  %v257 = vadd.f32 0.0, %v256
  %v258 = vpop.f32.mrb[0].mxu0
  %v259 = vadd.f32 0.0, %v258
  %v260 = vpop.f32.mrb[0].mxu0
  %v261 = vpop.f32.mrb[0].mxu0
  %262 = vdwg.mxu0
  %v263 = vadd.f32 %v20, %v257
  %v264 = vadd.f32 %v21, %v259
  %265 = vst [vmem:[#allocation2] sm:$0xff] %v263
  %266 = vst [vmem:[#allocation2 + $0x8] sm:$0xff] %v264
  // Predicated region
  $region18: #{forward_both.2} parent=0 // pred_check
    %p267 = pneg %p14
  $region19: #{forward_both.2} parent=0 // pred_check_branch
    %269 = sbr.rel (%p267) target = $region21
  $region20: #{forward_both.2} parent=0 // pred_region
    %v270 = vld [vmem:[#allocation2] sm:$0xff]
    %v271 = vld [vmem:[#allocation2 + $0x8] sm:$0xff]
    %v272 = vld [vmem:[%s2] sm:$0x3]
    %v274 = vlaneseq
    %v275 = vshrl.u32 %v274, 7
    %v276 = vsub.s32 0, %v275
    %v277 = vrot.slane %v272, %v276
    %v278 = vlaneseq
    %v279 = vshrl.u32 %v278, 7
    %v280 = vsub.s32 1, %v279
    %v281 = vrot.slane %v272, %v280
    %v284 = vadd.f32 %v270, %v277
    %v285 = vadd.f32 %v271, %v281
    %v286 = vmax.f32 %v284, 0.0
    %v287 = vmax.f32 %v285, 0.0
    %v288 = vpack.c.bf16 %v286, %v286
    %v289 = vpack.c.bf16 %v287, %v287
    %v292 = vunpack.c.l.b16 %v288
    %v293 = vunpack.c.l.b16 %v289
    %v294 = vpack.c.b16 %v293, %v292
    %296 = vst [vmem:[%s3] sm:$0xff] %v294
  $region21: #{forward_both.2} parent=0 // pred_fallthru
    _
  // Predicated region
  $region22: #{forward_both.2} parent=0 // pred_check
    _
  $region23: #{forward_both.2} parent=0 // pred_check_branch
    %298 = sbr.rel (0) target = $region25
  $region24: #{forward_both.2} parent=0 // pred_region
    _
  $region25: #{forward_both.2} parent=0 // pred_fallthru
    _
  // Predicated region
  $region26: #{forward_both.2} parent=0 // pred_check
    _
  $region27: #{forward_both.2} parent=0 // pred_check_branch
    %300 = sbr.rel (0) target = $region29
  $region28: #{forward_both.2} parent=0 // pred_region
    _
  $region29: #{forward_both.2} parent=0 // pred_fallthru
    _

// kernel: forward_both.3
$region0: #{forward_both.3}
  #allocation0 [shape = 'u32[]', space=smem, size = 0x4, offset = 0x4, fixed_abs, tag = 'smem constant byte address 0x4 - core index']
  #allocation1 [shape = 'u32[144,128]{1,0:T(1,128)}', space=vmem, size = 0x12000, scoped, tag = 'internal scratch']
  %s0 = inlined_call_operand.vmem [shape: bf16[8,256], index: 0, kind: input, shape index: {}]
  %s1 = inlined_call_operand.vmem [shape: bf16[256,256], index: 1, kind: input, shape index: {}]
  %s2 = inlined_call_operand.vmem [shape: f32[1,256], index: 2, kind: input, shape index: {}]
  %s3 = inlined_call_operand.vmem [shape: bf16[256,128], index: 3, kind: input, shape index: {}]
  %s4 = inlined_call_operand.vmem [shape: f32[1,128], index: 4, kind: input, shape index: {}]
  %s5 = inlined_call_operand.vmem [shape: bf16[128,128], index: 5, kind: input, shape index: {}]
  %s6 = inlined_call_operand.vmem [shape: f32[1,128], index: 6, kind: input, shape index: {}]
  %s7 = inlined_call_operand.vmem [shape: bf16[256,128], index: 7, kind: input, shape index: {}]
  %s8 = inlined_call_operand.vmem [shape: f32[1,128], index: 8, kind: input, shape index: {}]
  %s9 = inlined_call_operand.vmem [shape: bf16[128,128], index: 9, kind: input, shape index: {}]
  %s10 = inlined_call_operand.vmem [shape: f32[1,128], index: 10, kind: input, shape index: {}]
  %s11 = inlined_call_operand.vmem [shape: f32[8,128], index: 11, kind: output, shape index: {0}]
  %s12 = inlined_call_operand.vmem [shape: f32[8,128], index: 12, kind: output, shape index: {1}]
  %13 = xla_tuple %s11, %s12
  %s14 = sld [smem:[#allocation0]]
  $region62: #{forward_both.3} parent=0
    _
  %s16 = ssub.s32 1, %s14
  %s17 = scalar_select 0, %s16, %s14
  // Predicated region
  $region2: #{forward_both.3} parent=0 // pred_check
    _
  $region3: #{forward_both.3} parent=0 // pred_check_branch
    %19 = sbr.rel (0) target = $region5
  $region4: #{forward_both.3} parent=0 // pred_region
    _
  $region5: #{forward_both.3} parent=0 // pred_fallthru
    _
  // Predicated region
  $region6: #{forward_both.3} parent=0 // pred_check
    _
  $region7: #{forward_both.3} parent=0 // pred_check_branch
    %21 = sbr.rel (0) target = $region9
  $region8: #{forward_both.3} parent=0 // pred_region
    _
  $region9: #{forward_both.3} parent=0 // pred_fallthru
    _
  // Predicated region
  $region10: #{forward_both.3} parent=0 // pred_check
    _
  $region11: #{forward_both.3} parent=0 // pred_check_branch
    %23 = sbr.rel (0) target = $region13
  $region12: #{forward_both.3} parent=0 // pred_region
    _
  $region13: #{forward_both.3} parent=0 // pred_fallthru
    _
  // Predicated region
  $region14: #{forward_both.3} parent=0 // pred_check
    _
  $region15: #{forward_both.3} parent=0 // pred_check_branch
    %25 = sbr.rel (0) target = $region17
  $region16: #{forward_both.3} parent=0 // pred_region
    _
  $region17: #{forward_both.3} parent=0 // pred_fallthru
    _
  // Predicated region
  $region18: #{forward_both.3} parent=0 // pred_check
    _
  $region19: #{forward_both.3} parent=0 // pred_check_branch
    %27 = sbr.rel (0) target = $region21
  $region20: #{forward_both.3} parent=0 // pred_region
    _
  $region21: #{forward_both.3} parent=0 // pred_fallthru
    _
  // Predicated region
  $region22: #{forward_both.3} parent=0 // pred_check
    _
  $region23: #{forward_both.3} parent=0 // pred_check_branch
    %29 = sbr.rel (0) target = $region25
  $region24: #{forward_both.3} parent=0 // pred_region
    _
  $region25: #{forward_both.3} parent=0 // pred_fallthru
    _
  // Predicated region
  $region26: #{forward_both.3} parent=0 // pred_check
    _
  $region27: #{forward_both.3} parent=0 // pred_check_branch
    %31 = sbr.rel (0) target = $region29
  $region28: #{forward_both.3} parent=0 // pred_region
    _
  $region29: #{forward_both.3} parent=0 // pred_fallthru
    _
  // Predicated region
  $region30: #{forward_both.3} parent=0 // pred_check
    _
  $region31: #{forward_both.3} parent=0 // pred_check_branch
    %33 = sbr.rel (0) target = $region33
  $region32: #{forward_both.3} parent=0 // pred_region
    _
  $region33: #{forward_both.3} parent=0 // pred_fallthru
    _
  // Predicated region
  $region34: #{forward_both.3} parent=0 // pred_check
    _
  $region35: #{forward_both.3} parent=0 // pred_check_branch
    %35 = sbr.rel (0) target = $region37
  $region36: #{forward_both.3} parent=0 // pred_region
    _
  $region37: #{forward_both.3} parent=0 // pred_fallthru
    _
  // Predicated region
  $region38: #{forward_both.3} parent=0 // pred_check
    _
  $region39: #{forward_both.3} parent=0 // pred_check_branch
    %37 = sbr.rel (0) target = $region41
  $region40: #{forward_both.3} parent=0 // pred_region
    _
  $region41: #{forward_both.3} parent=0 // pred_fallthru
    _
  // Predicated region
  $region42: #{forward_both.3} parent=0 // pred_check
    _
  $region43: #{forward_both.3} parent=0 // pred_check_branch
    %39 = sbr.rel (0) target = $region45
  $region44: #{forward_both.3} parent=0 // pred_region
    _
  $region45: #{forward_both.3} parent=0 // pred_fallthru
    _
  %v41 = vld [vmem:[%s0] sm:$0xff]
  %v42 = vld [vmem:[%s1] sm:$0xff]
  %v43 = vld [vmem:[%s1 + $0x8] sm:$0xff]
  %v44 = vld [vmem:[%s1 + $0x10] sm:$0xff]
  %v45 = vld [vmem:[%s1 + $0x18] sm:$0xff]
  %v46 = vld [vmem:[%s1 + $0x20] sm:$0xff]
  %v47 = vld [vmem:[%s1 + $0x28] sm:$0xff]
  %v48 = vld [vmem:[%s1 + $0x30] sm:$0xff]
  %v49 = vld [vmem:[%s1 + $0x38] sm:$0xff]
  %v50 = vld [vmem:[%s1 + $0x40] sm:$0xff]
  %v51 = vld [vmem:[%s1 + $0x48] sm:$0xff]
  %v52 = vld [vmem:[%s1 + $0x50] sm:$0xff]
  %v53 = vld [vmem:[%s1 + $0x58] sm:$0xff]
  %v54 = vld [vmem:[%s1 + $0x60] sm:$0xff]
  %v55 = vld [vmem:[%s1 + $0x68] sm:$0xff]
  %v56 = vld [vmem:[%s1 + $0x70] sm:$0xff]
  %v57 = vld [vmem:[%s1 + $0x78] sm:$0xff]
  %v58 = vld [vmem:[%s1 + $0x80] sm:$0xff]
  %v59 = vld [vmem:[%s1 + $0x88] sm:$0xff]
  %v60 = vld [vmem:[%s1 + $0x90] sm:$0xff]
  %v61 = vld [vmem:[%s1 + $0x98] sm:$0xff]
  %v62 = vld [vmem:[%s1 + $0xa0] sm:$0xff]
  %v63 = vld [vmem:[%s1 + $0xa8] sm:$0xff]
  %v64 = vld [vmem:[%s1 + $0xb0] sm:$0xff]
  %v65 = vld [vmem:[%s1 + $0xb8] sm:$0xff]
  %v66 = vld [vmem:[%s1 + $0xc0] sm:$0xff]
  %v67 = vld [vmem:[%s1 + $0xc8] sm:$0xff]
  %v68 = vld [vmem:[%s1 + $0xd0] sm:$0xff]
  %v69 = vld [vmem:[%s1 + $0xd8] sm:$0xff]
  %v70 = vld [vmem:[%s1 + $0xe0] sm:$0xff]
  %v71 = vld [vmem:[%s1 + $0xe8] sm:$0xff]
  %v72 = vld [vmem:[%s1 + $0xf0] sm:$0xff]
  %v73 = vld [vmem:[%s1 + $0xf8] sm:$0xff]
  %v74 = vld [vmem:[%s2] sm:$0x3]
  %v76 = vlaneseq
  %v77 = vshrl.u32 %v76, 7
  %v78 = vsub.s32 0, %v77
  %v79 = vrot.slane %v74, %v78
  %v80 = vlaneseq
  %v81 = vshrl.u32 %v80, 7
  %v82 = vsub.s32 1, %v81
  %v83 = vrot.slane %v74, %v82
  %v87 = vunpack.c.l.b16 %v41
  %v88 = vunpack.c.h.b16 %v41
  %v89 = vpack.c.b16 %v87, %v87
  %v90 = vpack.c.b16 %v88, %v88
  %v125 = vunpack.c.l.b16 %v42
  %v126 = vunpack.c.h.b16 %v42
  %v127 = vunpack.c.l.b16 %v43
  %v128 = vunpack.c.h.b16 %v43
  %v129 = vunpack.c.l.b16 %v44
  %v130 = vunpack.c.h.b16 %v44
  %v131 = vunpack.c.l.b16 %v45
  %v132 = vunpack.c.h.b16 %v45
  %v133 = vunpack.c.l.b16 %v46
  %v134 = vunpack.c.h.b16 %v46
  %v135 = vunpack.c.l.b16 %v47
  %v136 = vunpack.c.h.b16 %v47
  %v137 = vunpack.c.l.b16 %v48
  %v138 = vunpack.c.h.b16 %v48
  %v139 = vunpack.c.l.b16 %v49
  %v140 = vunpack.c.h.b16 %v49
  %v141 = vunpack.c.l.b16 %v50
  %v142 = vunpack.c.h.b16 %v50
  %v143 = vunpack.c.l.b16 %v51
  %v144 = vunpack.c.h.b16 %v51
  %v145 = vunpack.c.l.b16 %v52
  %v146 = vunpack.c.h.b16 %v52
  %v147 = vunpack.c.l.b16 %v53
  %v148 = vunpack.c.h.b16 %v53
  %v149 = vunpack.c.l.b16 %v54
  %v150 = vunpack.c.h.b16 %v54
  %v151 = vunpack.c.l.b16 %v55
  %v152 = vunpack.c.h.b16 %v55
  %v153 = vunpack.c.l.b16 %v56
  %v154 = vunpack.c.h.b16 %v56
  %v155 = vunpack.c.l.b16 %v57
  %v156 = vunpack.c.h.b16 %v57
  %v157 = vunpack.c.l.b16 %v58
  %v158 = vunpack.c.h.b16 %v58
  %v159 = vunpack.c.l.b16 %v59
  %v160 = vunpack.c.h.b16 %v59
  %v161 = vunpack.c.l.b16 %v60
  %v162 = vunpack.c.h.b16 %v60
  %v163 = vunpack.c.l.b16 %v61
  %v164 = vunpack.c.h.b16 %v61
  %v165 = vunpack.c.l.b16 %v62
  %v166 = vunpack.c.h.b16 %v62
  %v167 = vunpack.c.l.b16 %v63
  %v168 = vunpack.c.h.b16 %v63
  %v169 = vunpack.c.l.b16 %v64
  %v170 = vunpack.c.h.b16 %v64
  %v171 = vunpack.c.l.b16 %v65
  %v172 = vunpack.c.h.b16 %v65
  %v173 = vunpack.c.l.b16 %v66
  %v174 = vunpack.c.h.b16 %v66
  %v175 = vunpack.c.l.b16 %v67
  %v176 = vunpack.c.h.b16 %v67
  %v177 = vunpack.c.l.b16 %v68
  %v178 = vunpack.c.h.b16 %v68
  %v179 = vunpack.c.l.b16 %v69
  %v180 = vunpack.c.h.b16 %v69
  %v181 = vunpack.c.l.b16 %v70
  %v182 = vunpack.c.h.b16 %v70
  %v183 = vunpack.c.l.b16 %v71
  %v184 = vunpack.c.h.b16 %v71
  %v185 = vunpack.c.l.b16 %v72
  %v186 = vunpack.c.h.b16 %v72
  %v187 = vunpack.c.l.b16 %v73
  %v188 = vunpack.c.h.b16 %v73
  %v189 = vpack.c.b16 %v127, %v125
  %v190 = vpack.c.b16 %v128, %v126
  %v191 = vpack.c.b16 %v131, %v129
  %v192 = vpack.c.b16 %v132, %v130
  %v193 = vpack.c.b16 %v135, %v133
  %v194 = vpack.c.b16 %v136, %v134
  %v195 = vpack.c.b16 %v139, %v137
  %v196 = vpack.c.b16 %v140, %v138
  %v197 = vpack.c.b16 %v143, %v141
  %v198 = vpack.c.b16 %v144, %v142
  %v199 = vpack.c.b16 %v147, %v145
  %v200 = vpack.c.b16 %v148, %v146
  %v201 = vpack.c.b16 %v151, %v149
  %v202 = vpack.c.b16 %v152, %v150
  %v203 = vpack.c.b16 %v155, %v153
  %v204 = vpack.c.b16 %v156, %v154
  %v205 = vpack.c.b16 %v159, %v157
  %v206 = vpack.c.b16 %v160, %v158
  %v207 = vpack.c.b16 %v163, %v161
  %v208 = vpack.c.b16 %v164, %v162
  %v209 = vpack.c.b16 %v167, %v165
  %v210 = vpack.c.b16 %v168, %v166
  %v211 = vpack.c.b16 %v171, %v169
  %v212 = vpack.c.b16 %v172, %v170
  %v213 = vpack.c.b16 %v175, %v173
  %v214 = vpack.c.b16 %v176, %v174
  %v215 = vpack.c.b16 %v179, %v177
  %v216 = vpack.c.b16 %v180, %v178
  %v217 = vpack.c.b16 %v183, %v181
  %v218 = vpack.c.b16 %v184, %v182
  %v219 = vpack.c.b16 %v187, %v185
  %v220 = vpack.c.b16 %v188, %v186
  %253 = vmatprep.subr.bf16.mxu0 %v190
  %254 = vmatpush1.bf16.msra.mxu0 %v189
  %255 = vmatprep.subr.bf16.mxu0 %v192
  %256 = vmatpush1.bf16.msra.mxu0 %v191
  %257 = vmatprep.subr.bf16.mxu0 %v194
  %258 = vmatpush1.bf16.msra.mxu0 %v193
  %259 = vmatprep.subr.bf16.mxu0 %v196
  %260 = vmatpush1.bf16.msra.mxu0 %v195
  %261 = vmatprep.subr.bf16.mxu0 %v198
  %262 = vmatpush1.bf16.msra.mxu0 %v197
  %263 = vmatprep.subr.bf16.mxu0 %v200
  %264 = vmatpush1.bf16.msra.mxu0 %v199
  %265 = vmatprep.subr.bf16.mxu0 %v202
  %266 = vmatpush1.bf16.msra.mxu0 %v201
  %267 = vmatprep.subr.bf16.mxu0 %v204
  %268 = vmatpush1.bf16.msra.mxu0 %v203
  %269 = vmatprep.subr.bf16.mxu0 %v206
  %270 = vmatpush1.bf16.msra.mxu0 %v205
  %271 = vmatprep.subr.bf16.mxu0 %v208
  %272 = vmatpush1.bf16.msra.mxu0 %v207
  %273 = vmatprep.subr.bf16.mxu0 %v210
  %274 = vmatpush1.bf16.msra.mxu0 %v209
  %275 = vmatprep.subr.bf16.mxu0 %v212
  %276 = vmatpush1.bf16.msra.mxu0 %v211
  %277 = vmatprep.subr.bf16.mxu0 %v214
  %278 = vmatpush1.bf16.msra.mxu0 %v213
  %279 = vmatprep.subr.bf16.mxu0 %v216
  %280 = vmatpush1.bf16.msra.mxu0 %v215
  %281 = vmatprep.subr.bf16.mxu0 %v218
  %282 = vmatpush1.bf16.msra.mxu0 %v217
  %283 = vmatprep.subr.bf16.mxu0 %v220
  %284 = vmatpush1.bf16.msra.mxu0 %v219
  %285 = vmatprep.mubr.bf16.mxu0 %v90
  %286 = vmatmul.mubr.bf16.gmra.mrb[0].mxu0 %v89
  %v287 = vpop.f32.mrb[0].mxu0
  %v288 = vadd.f32 %v79, %v287
  %v289 = vpop.f32.mrb[0].mxu0
  %v290 = vadd.f32 %v83, %v289
  %v291 = vpop.f32.mrb[0].mxu0
  %v292 = vpop.f32.mrb[0].mxu0
  %293 = vdwg.mxu0
  %v294 = vmax.f32 %v288, 0.0
  %v295 = vmax.f32 %v290, 0.0
  %v296 = vpack.c.bf16 %v294, %v294
  %v297 = vpack.c.bf16 %v295, %v295
  %v298 = vld [vmem:[%s3] sm:$0xf]
  %v299 = vld [vmem:[%s3 + $0x4] sm:$0xf]
  %v300 = vld [vmem:[%s3 + $0x8] sm:$0xf]
  %v301 = vld [vmem:[%s3 + $0xc] sm:$0xf]
  %v302 = vld [vmem:[%s3 + $0x10] sm:$0xf]
  %v303 = vld [vmem:[%s3 + $0x14] sm:$0xf]
  %v304 = vld [vmem:[%s3 + $0x18] sm:$0xf]
  %v305 = vld [vmem:[%s3 + $0x1c] sm:$0xf]
  %v306 = vld [vmem:[%s3 + $0x20] sm:$0xf]
  %v307 = vld [vmem:[%s3 + $0x24] sm:$0xf]
  %v308 = vld [vmem:[%s3 + $0x28] sm:$0xf]
  %v309 = vld [vmem:[%s3 + $0x2c] sm:$0xf]
  %v310 = vld [vmem:[%s3 + $0x30] sm:$0xf]
  %v311 = vld [vmem:[%s3 + $0x34] sm:$0xf]
  %v312 = vld [vmem:[%s3 + $0x38] sm:$0xf]
  %v313 = vld [vmem:[%s3 + $0x3c] sm:$0xf]
  %v314 = vld [vmem:[%s3 + $0x40] sm:$0xf]
  %v315 = vld [vmem:[%s3 + $0x44] sm:$0xf]
  %v316 = vld [vmem:[%s3 + $0x48] sm:$0xf]
  %v317 = vld [vmem:[%s3 + $0x4c] sm:$0xf]
  %v318 = vld [vmem:[%s3 + $0x50] sm:$0xf]
  %v319 = vld [vmem:[%s3 + $0x54] sm:$0xf]
  %v320 = vld [vmem:[%s3 + $0x58] sm:$0xf]
  %v321 = vld [vmem:[%s3 + $0x5c] sm:$0xf]
  %v322 = vld [vmem:[%s3 + $0x60] sm:$0xf]
  %v323 = vld [vmem:[%s3 + $0x64] sm:$0xf]
  %v324 = vld [vmem:[%s3 + $0x68] sm:$0xf]
  %v325 = vld [vmem:[%s3 + $0x6c] sm:$0xf]
  %v326 = vld [vmem:[%s3 + $0x70] sm:$0xf]
  %v327 = vld [vmem:[%s3 + $0x74] sm:$0xf]
  %v328 = vld [vmem:[%s3 + $0x78] sm:$0xf]
  %v329 = vld [vmem:[%s3 + $0x7c] sm:$0xf]
  %v330 = vld [vmem:[%s4] sm:$0x1]
  %v332 = vlaneseq
  %v333 = vshrl.u32 %v332, 7
  %v334 = vsub.s32 0, %v333
  %v335 = vrot.slane %v330, %v334
  %v369 = vunpack.c.l.b16 %v298
  %v370 = vunpack.c.l.b16 %v299
  %v371 = vunpack.c.l.b16 %v300
  %v372 = vunpack.c.l.b16 %v301
  %v373 = vunpack.c.l.b16 %v302
  %v374 = vunpack.c.l.b16 %v303
  %v375 = vunpack.c.l.b16 %v304
  %v376 = vunpack.c.l.b16 %v305
  %v377 = vunpack.c.l.b16 %v306
  %v378 = vunpack.c.l.b16 %v307
  %v379 = vunpack.c.l.b16 %v308
  %v380 = vunpack.c.l.b16 %v309
  %v381 = vunpack.c.l.b16 %v310
  %v382 = vunpack.c.l.b16 %v311
  %v383 = vunpack.c.l.b16 %v312
  %v384 = vunpack.c.l.b16 %v313
  %v385 = vunpack.c.l.b16 %v314
  %v386 = vunpack.c.l.b16 %v315
  %v387 = vunpack.c.l.b16 %v316
  %v388 = vunpack.c.l.b16 %v317
  %v389 = vunpack.c.l.b16 %v318
  %v390 = vunpack.c.l.b16 %v319
  %v391 = vunpack.c.l.b16 %v320
  %v392 = vunpack.c.l.b16 %v321
  %v393 = vunpack.c.l.b16 %v322
  %v394 = vunpack.c.l.b16 %v323
  %v395 = vunpack.c.l.b16 %v324
  %v396 = vunpack.c.l.b16 %v325
  %v397 = vunpack.c.l.b16 %v326
  %v398 = vunpack.c.l.b16 %v327
  %v399 = vunpack.c.l.b16 %v328
  %v400 = vunpack.c.l.b16 %v329
  %v401 = vpack.c.b16 %v370, %v369
  %v402 = vpack.c.b16 %v372, %v371
  %v403 = vpack.c.b16 %v374, %v373
  %v404 = vpack.c.b16 %v376, %v375
  %v405 = vpack.c.b16 %v378, %v377
  %v406 = vpack.c.b16 %v380, %v379
  %v407 = vpack.c.b16 %v382, %v381
  %v408 = vpack.c.b16 %v384, %v383
  %v409 = vpack.c.b16 %v386, %v385
  %v410 = vpack.c.b16 %v388, %v387
  %v411 = vpack.c.b16 %v390, %v389
  %v412 = vpack.c.b16 %v392, %v391
  %v413 = vpack.c.b16 %v394, %v393
  %v414 = vpack.c.b16 %v396, %v395
  %v415 = vpack.c.b16 %v398, %v397
  %v416 = vpack.c.b16 %v400, %v399
  %433 = vmatprep.subr.bf16.mxu0 0
  %434 = vmatpush1.bf16.msra.mxu0 %v401
  %435 = vmatprep.subr.bf16.mxu0 0
  %436 = vmatpush1.bf16.msra.mxu0 %v402
  %437 = vmatprep.subr.bf16.mxu0 0
  %438 = vmatpush1.bf16.msra.mxu0 %v403
  %439 = vmatprep.subr.bf16.mxu0 0
  %440 = vmatpush1.bf16.msra.mxu0 %v404
  %441 = vmatprep.subr.bf16.mxu0 0
  %442 = vmatpush1.bf16.msra.mxu0 %v405
  %443 = vmatprep.subr.bf16.mxu0 0
  %444 = vmatpush1.bf16.msra.mxu0 %v406
  %445 = vmatprep.subr.bf16.mxu0 0
  %446 = vmatpush1.bf16.msra.mxu0 %v407
  %447 = vmatprep.subr.bf16.mxu0 0
  %448 = vmatpush1.bf16.msra.mxu0 %v408
  %449 = vmatprep.subr.bf16.mxu0 0
  %450 = vmatpush1.bf16.msra.mxu0 %v409
  %451 = vmatprep.subr.bf16.mxu0 0
  %452 = vmatpush1.bf16.msra.mxu0 %v410
  %453 = vmatprep.subr.bf16.mxu0 0
  %454 = vmatpush1.bf16.msra.mxu0 %v411
  %455 = vmatprep.subr.bf16.mxu0 0
  %456 = vmatpush1.bf16.msra.mxu0 %v412
  %457 = vmatprep.subr.bf16.mxu0 0
  %458 = vmatpush1.bf16.msra.mxu0 %v413
  %459 = vmatprep.subr.bf16.mxu0 0
  %460 = vmatpush1.bf16.msra.mxu0 %v414
  %461 = vmatprep.subr.bf16.mxu0 0
  %462 = vmatpush1.bf16.msra.mxu0 %v415
  %463 = vmatprep.subr.bf16.mxu0 0
  %464 = vmatpush1.bf16.msra.mxu0 %v416
  %465 = vmatprep.mubr.bf16.mxu0 %v297
  %466 = vmatmul.mubr.bf16.gmra.mrb[0].mxu0 %v296
  %v467 = vpop.f32.mrb[0].mxu0
  %v468 = vadd.f32 %v335, %v467
  %v469 = vpop.f32.mrb[0].mxu0
  %v470 = vpop.f32.mrb[0].mxu0
  %v471 = vpop.f32.mrb[0].mxu0
  %472 = vdwg.mxu0
  %v473 = vmax.f32 %v468, 0.0
  %v474 = vpack.c.bf16 %v473, %v473
  %v475 = vld [vmem:[%s5] sm:$0xf]
  %v476 = vld [vmem:[%s5 + $0x4] sm:$0xf]
  %v477 = vld [vmem:[%s5 + $0x8] sm:$0xf]
  %v478 = vld [vmem:[%s5 + $0xc] sm:$0xf]
  %v479 = vld [vmem:[%s5 + $0x10] sm:$0xf]
  %v480 = vld [vmem:[%s5 + $0x14] sm:$0xf]
  %v481 = vld [vmem:[%s5 + $0x18] sm:$0xf]
  %v482 = vld [vmem:[%s5 + $0x1c] sm:$0xf]
  %v483 = vld [vmem:[%s5 + $0x20] sm:$0xf]
  %v484 = vld [vmem:[%s5 + $0x24] sm:$0xf]
  %v485 = vld [vmem:[%s5 + $0x28] sm:$0xf]
  %v486 = vld [vmem:[%s5 + $0x2c] sm:$0xf]
  %v487 = vld [vmem:[%s5 + $0x30] sm:$0xf]
  %v488 = vld [vmem:[%s5 + $0x34] sm:$0xf]
  %v489 = vld [vmem:[%s5 + $0x38] sm:$0xf]
  %v490 = vld [vmem:[%s5 + $0x3c] sm:$0xf]
  %v491 = vld [vmem:[%s6] sm:$0x1]
  %v493 = vlaneseq
  %v494 = vshrl.u32 %v493, 7
  %v495 = vsub.s32 0, %v494
  %v496 = vrot.slane %v491, %v495
  %v514 = vunpack.c.l.b16 %v475
  %v515 = vunpack.c.l.b16 %v476
  %v516 = vunpack.c.l.b16 %v477
  %v517 = vunpack.c.l.b16 %v478
  %v518 = vunpack.c.l.b16 %v479
  %v519 = vunpack.c.l.b16 %v480
  %v520 = vunpack.c.l.b16 %v481
  %v521 = vunpack.c.l.b16 %v482
  %v522 = vunpack.c.l.b16 %v483
  %v523 = vunpack.c.l.b16 %v484
  %v524 = vunpack.c.l.b16 %v485
  %v525 = vunpack.c.l.b16 %v486
  %v526 = vunpack.c.l.b16 %v487
  %v527 = vunpack.c.l.b16 %v488
  %v528 = vunpack.c.l.b16 %v489
  %v529 = vunpack.c.l.b16 %v490
  %v530 = vpack.c.b16 %v515, %v514
  %v531 = vpack.c.b16 %v517, %v516
  %v532 = vpack.c.b16 %v519, %v518
  %v533 = vpack.c.b16 %v521, %v520
  %v534 = vpack.c.b16 %v523, %v522
  %v535 = vpack.c.b16 %v525, %v524
  %v536 = vpack.c.b16 %v527, %v526
  %v537 = vpack.c.b16 %v529, %v528
  %546 = vmatprep.subr.bf16.mxu0 0
  %547 = vmatpush1.bf16.msra.mxu0 %v530
  %548 = vmatprep.subr.bf16.mxu0 0
  %549 = vmatpush1.bf16.msra.mxu0 %v531
  %550 = vmatprep.subr.bf16.mxu0 0
  %551 = vmatpush1.bf16.msra.mxu0 %v532
  %552 = vmatprep.subr.bf16.mxu0 0
  %553 = vmatpush1.bf16.msra.mxu0 %v533
  %554 = vmatprep.subr.bf16.mxu0 0
  %555 = vmatpush1.bf16.msra.mxu0 %v534
  %556 = vmatprep.subr.bf16.mxu0 0
  %557 = vmatpush1.bf16.msra.mxu0 %v535
  %558 = vmatprep.subr.bf16.mxu0 0
  %559 = vmatpush1.bf16.msra.mxu0 %v536
  %560 = vmatprep.subr.bf16.mxu0 0
  %561 = vmatpush1.bf16.msra.mxu0 %v537
  %562 = vmatprep.subr.bf16.mxu0 0
  %563 = vmatpush1.bf16.msra.mxu0 0
  %564 = vmatprep.subr.bf16.mxu0 0
  %565 = vmatpush1.bf16.msra.mxu0 0
  %566 = vmatprep.subr.bf16.mxu0 0
  %567 = vmatpush1.bf16.msra.mxu0 0
  %568 = vmatprep.subr.bf16.mxu0 0
  %569 = vmatpush1.bf16.msra.mxu0 0
  %570 = vmatprep.subr.bf16.mxu0 0
  %571 = vmatpush1.bf16.msra.mxu0 0
  %572 = vmatprep.subr.bf16.mxu0 0
  %573 = vmatpush1.bf16.msra.mxu0 0
  %574 = vmatprep.subr.bf16.mxu0 0
  %575 = vmatpush1.bf16.msra.mxu0 0
  %576 = vmatprep.subr.bf16.mxu0 0
  %577 = vmatpush1.bf16.msra.mxu0 0
  %578 = vmatprep.mubr.bf16.mxu0 0
  %579 = vmatmul.mubr.bf16.gmra.mrb[0].mxu0 %v474
  %v580 = vpop.f32.mrb[0].mxu0
  %v581 = vadd.f32 %v496, %v580
  %v582 = vpop.f32.mrb[0].mxu0
  %v583 = vpop.f32.mrb[0].mxu0
  %v584 = vpop.f32.mrb[0].mxu0
  %585 = vdwg.mxu0
  %586 = vst [vmem:[%s11] sm:$0xff] %v581
  %v587 = vld [vmem:[%s7] sm:$0xf]
  %v588 = vld [vmem:[%s7 + $0x4] sm:$0xf]
  %v589 = vld [vmem:[%s7 + $0x8] sm:$0xf]
  %v590 = vld [vmem:[%s7 + $0xc] sm:$0xf]
  %v591 = vld [vmem:[%s7 + $0x10] sm:$0xf]
  %v592 = vld [vmem:[%s7 + $0x14] sm:$0xf]
  %v593 = vld [vmem:[%s7 + $0x18] sm:$0xf]
  %v594 = vld [vmem:[%s7 + $0x1c] sm:$0xf]
  %v595 = vld [vmem:[%s7 + $0x20] sm:$0xf]
  %v596 = vld [vmem:[%s7 + $0x24] sm:$0xf]
  %v597 = vld [vmem:[%s7 + $0x28] sm:$0xf]
  %v598 = vld [vmem:[%s7 + $0x2c] sm:$0xf]
  %v599 = vld [vmem:[%s7 + $0x30] sm:$0xf]
  %v600 = vld [vmem:[%s7 + $0x34] sm:$0xf]
  %v601 = vld [vmem:[%s7 + $0x38] sm:$0xf]
  %v602 = vld [vmem:[%s7 + $0x3c] sm:$0xf]
  %v603 = vld [vmem:[%s7 + $0x40] sm:$0xf]
  %v604 = vld [vmem:[%s7 + $0x44] sm:$0xf]
  %v605 = vld [vmem:[%s7 + $0x48] sm:$0xf]
  %v606 = vld [vmem:[%s7 + $0x4c] sm:$0xf]
  %v607 = vld [vmem:[%s7 + $0x50] sm:$0xf]
  %v608 = vld [vmem:[%s7 + $0x54] sm:$0xf]
  %v609 = vld [vmem:[%s7 + $0x58] sm:$0xf]
  %v610 = vld [vmem:[%s7 + $0x5c] sm:$0xf]
  %v611 = vld [vmem:[%s7 + $0x60] sm:$0xf]
  %v612 = vld [vmem:[%s7 + $0x64] sm:$0xf]
  %v613 = vld [vmem:[%s7 + $0x68] sm:$0xf]
  %v614 = vld [vmem:[%s7 + $0x6c] sm:$0xf]
  %v615 = vld [vmem:[%s7 + $0x70] sm:$0xf]
  %v616 = vld [vmem:[%s7 + $0x74] sm:$0xf]
  %v617 = vld [vmem:[%s7 + $0x78] sm:$0xf]
  %v618 = vld [vmem:[%s7 + $0x7c] sm:$0xf]
  %v619 = vld [vmem:[%s8] sm:$0x1]
  %v621 = vlaneseq
  %v622 = vshrl.u32 %v621, 7
  %v623 = vsub.s32 0, %v622
  %v624 = vrot.slane %v619, %v623
  %v658 = vunpack.c.l.b16 %v587
  %v659 = vunpack.c.l.b16 %v588
  %v660 = vunpack.c.l.b16 %v589
  %v661 = vunpack.c.l.b16 %v590
  %v662 = vunpack.c.l.b16 %v591
  %v663 = vunpack.c.l.b16 %v592
  %v664 = vunpack.c.l.b16 %v593
  %v665 = vunpack.c.l.b16 %v594
  %v666 = vunpack.c.l.b16 %v595
  %v667 = vunpack.c.l.b16 %v596
  %v668 = vunpack.c.l.b16 %v597
  %v669 = vunpack.c.l.b16 %v598
  %v670 = vunpack.c.l.b16 %v599
  %v671 = vunpack.c.l.b16 %v600
  %v672 = vunpack.c.l.b16 %v601
  %v673 = vunpack.c.l.b16 %v602
  %v674 = vunpack.c.l.b16 %v603
  %v675 = vunpack.c.l.b16 %v604
  %v676 = vunpack.c.l.b16 %v605
  %v677 = vunpack.c.l.b16 %v606
  %v678 = vunpack.c.l.b16 %v607
  %v679 = vunpack.c.l.b16 %v608
  %v680 = vunpack.c.l.b16 %v609
  %v681 = vunpack.c.l.b16 %v610
  %v682 = vunpack.c.l.b16 %v611
  %v683 = vunpack.c.l.b16 %v612
  %v684 = vunpack.c.l.b16 %v613
  %v685 = vunpack.c.l.b16 %v614
  %v686 = vunpack.c.l.b16 %v615
  %v687 = vunpack.c.l.b16 %v616
  %v688 = vunpack.c.l.b16 %v617
  %v689 = vunpack.c.l.b16 %v618
  %v690 = vpack.c.b16 %v659, %v658
  %v691 = vpack.c.b16 %v661, %v660
  %v692 = vpack.c.b16 %v663, %v662
  %v693 = vpack.c.b16 %v665, %v664
  %v694 = vpack.c.b16 %v667, %v666
  %v695 = vpack.c.b16 %v669, %v668
  %v696 = vpack.c.b16 %v671, %v670
  %v697 = vpack.c.b16 %v673, %v672
  %v698 = vpack.c.b16 %v675, %v674
  %v699 = vpack.c.b16 %v677, %v676
  %v700 = vpack.c.b16 %v679, %v678
  %v701 = vpack.c.b16 %v681, %v680
  %v702 = vpack.c.b16 %v683, %v682
  %v703 = vpack.c.b16 %v685, %v684
  %v704 = vpack.c.b16 %v687, %v686
  %v705 = vpack.c.b16 %v689, %v688
  %722 = vmatprep.subr.bf16.mxu0 0
  %723 = vmatpush1.bf16.msra.mxu0 %v690
  %724 = vmatprep.subr.bf16.mxu0 0
  %725 = vmatpush1.bf16.msra.mxu0 %v691
  %726 = vmatprep.subr.bf16.mxu0 0
  %727 = vmatpush1.bf16.msra.mxu0 %v692
  %728 = vmatprep.subr.bf16.mxu0 0
  %729 = vmatpush1.bf16.msra.mxu0 %v693
  %730 = vmatprep.subr.bf16.mxu0 0
  %731 = vmatpush1.bf16.msra.mxu0 %v694
  %732 = vmatprep.subr.bf16.mxu0 0
  %733 = vmatpush1.bf16.msra.mxu0 %v695
  %734 = vmatprep.subr.bf16.mxu0 0
  %735 = vmatpush1.bf16.msra.mxu0 %v696
  %736 = vmatprep.subr.bf16.mxu0 0
  %737 = vmatpush1.bf16.msra.mxu0 %v697
  %738 = vmatprep.subr.bf16.mxu0 0
  %739 = vmatpush1.bf16.msra.mxu0 %v698
  %740 = vmatprep.subr.bf16.mxu0 0
  %741 = vmatpush1.bf16.msra.mxu0 %v699
  %742 = vmatprep.subr.bf16.mxu0 0
  %743 = vmatpush1.bf16.msra.mxu0 %v700
  %744 = vmatprep.subr.bf16.mxu0 0
  %745 = vmatpush1.bf16.msra.mxu0 %v701
  %746 = vmatprep.subr.bf16.mxu0 0
  %747 = vmatpush1.bf16.msra.mxu0 %v702
  %748 = vmatprep.subr.bf16.mxu0 0
  %749 = vmatpush1.bf16.msra.mxu0 %v703
  %750 = vmatprep.subr.bf16.mxu0 0
  %751 = vmatpush1.bf16.msra.mxu0 %v704
  %752 = vmatprep.subr.bf16.mxu0 0
  %753 = vmatpush1.bf16.msra.mxu0 %v705
  %754 = vmatprep.mubr.bf16.mxu0 %v297
  %755 = vmatmul.mubr.bf16.gmra.mrb[0].mxu0 %v296
  %v756 = vpop.f32.mrb[0].mxu0
  %v757 = vadd.f32 %v624, %v756
  %v758 = vpop.f32.mrb[0].mxu0
  %v759 = vpop.f32.mrb[0].mxu0
  %v760 = vpop.f32.mrb[0].mxu0
  %761 = vdwg.mxu0
  %v762 = vmax.f32 %v757, 0.0
  %v763 = vpack.c.bf16 %v762, %v762
  %v764 = vld [vmem:[%s9] sm:$0xf]
  %v765 = vld [vmem:[%s9 + $0x4] sm:$0xf]
  %v766 = vld [vmem:[%s9 + $0x8] sm:$0xf]
  %v767 = vld [vmem:[%s9 + $0xc] sm:$0xf]
  %v768 = vld [vmem:[%s9 + $0x10] sm:$0xf]
  %v769 = vld [vmem:[%s9 + $0x14] sm:$0xf]
  %v770 = vld [vmem:[%s9 + $0x18] sm:$0xf]
  %v771 = vld [vmem:[%s9 + $0x1c] sm:$0xf]
  %v772 = vld [vmem:[%s9 + $0x20] sm:$0xf]
  %v773 = vld [vmem:[%s9 + $0x24] sm:$0xf]
  %v774 = vld [vmem:[%s9 + $0x28] sm:$0xf]
  %v775 = vld [vmem:[%s9 + $0x2c] sm:$0xf]
  %v776 = vld [vmem:[%s9 + $0x30] sm:$0xf]
  %v777 = vld [vmem:[%s9 + $0x34] sm:$0xf]
  %v778 = vld [vmem:[%s9 + $0x38] sm:$0xf]
  %v779 = vld [vmem:[%s9 + $0x3c] sm:$0xf]
  %v780 = vld [vmem:[%s10] sm:$0x1]
  %v782 = vlaneseq
  %v783 = vshrl.u32 %v782, 7
  %v784 = vsub.s32 0, %v783
  %v785 = vrot.slane %v780, %v784
  %v803 = vunpack.c.l.b16 %v764
  %v804 = vunpack.c.l.b16 %v765
  %v805 = vunpack.c.l.b16 %v766
  %v806 = vunpack.c.l.b16 %v767
  %v807 = vunpack.c.l.b16 %v768
  %v808 = vunpack.c.l.b16 %v769
  %v809 = vunpack.c.l.b16 %v770
  %v810 = vunpack.c.l.b16 %v771
  %v811 = vunpack.c.l.b16 %v772
  %v812 = vunpack.c.l.b16 %v773
  %v813 = vunpack.c.l.b16 %v774
  %v814 = vunpack.c.l.b16 %v775
  %v815 = vunpack.c.l.b16 %v776
  %v816 = vunpack.c.l.b16 %v777
  %v817 = vunpack.c.l.b16 %v778
  %v818 = vunpack.c.l.b16 %v779
  %v819 = vpack.c.b16 %v804, %v803
  %v820 = vpack.c.b16 %v806, %v805
  %v821 = vpack.c.b16 %v808, %v807
  %v822 = vpack.c.b16 %v810, %v809
  %v823 = vpack.c.b16 %v812, %v811
  %v824 = vpack.c.b16 %v814, %v813
  %v825 = vpack.c.b16 %v816, %v815
  %v826 = vpack.c.b16 %v818, %v817
  %835 = vmatprep.subr.bf16.mxu0 0
  %836 = vmatpush1.bf16.msra.mxu0 %v819
  %837 = vmatprep.subr.bf16.mxu0 0
  %838 = vmatpush1.bf16.msra.mxu0 %v820
  %839 = vmatprep.subr.bf16.mxu0 0
  %840 = vmatpush1.bf16.msra.mxu0 %v821
  %841 = vmatprep.subr.bf16.mxu0 0
  %842 = vmatpush1.bf16.msra.mxu0 %v822
  %843 = vmatprep.subr.bf16.mxu0 0
  %844 = vmatpush1.bf16.msra.mxu0 %v823
  %845 = vmatprep.subr.bf16.mxu0 0
  %846 = vmatpush1.bf16.msra.mxu0 %v824
  %847 = vmatprep.subr.bf16.mxu0 0
  %848 = vmatpush1.bf16.msra.mxu0 %v825
  %849 = vmatprep.subr.bf16.mxu0 0
  %850 = vmatpush1.bf16.msra.mxu0 %v826
  %851 = vmatprep.subr.bf16.mxu0 0
  %852 = vmatpush1.bf16.msra.mxu0 0
  %853 = vmatprep.subr.bf16.mxu0 0
  %854 = vmatpush1.bf16.msra.mxu0 0
  %855 = vmatprep.subr.bf16.mxu0 0
  %856 = vmatpush1.bf16.msra.mxu0 0
  %857 = vmatprep.subr.bf16.mxu0 0
  %858 = vmatpush1.bf16.msra.mxu0 0
  %859 = vmatprep.subr.bf16.mxu0 0
  %860 = vmatpush1.bf16.msra.mxu0 0
  %861 = vmatprep.subr.bf16.mxu0 0
  %862 = vmatpush1.bf16.msra.mxu0 0
  %863 = vmatprep.subr.bf16.mxu0 0
  %864 = vmatpush1.bf16.msra.mxu0 0
  %865 = vmatprep.subr.bf16.mxu0 0
  %866 = vmatpush1.bf16.msra.mxu0 0
  %867 = vmatprep.mubr.bf16.mxu0 0
  %868 = vmatmul.mubr.bf16.gmra.mrb[0].mxu0 %v763
  %v869 = vpop.f32.mrb[0].mxu0
  %v870 = vadd.f32 %v785, %v869
  %v871 = vpop.f32.mrb[0].mxu0
  %v872 = vpop.f32.mrb[0].mxu0
  %v873 = vpop.f32.mrb[0].mxu0
  %874 = vdwg.mxu0
  %875 = vst [vmem:[%s12] sm:$0xff] %v870
  // Predicated region
  $region46: #{forward_both.3} parent=0 // pred_check
    _
  $region47: #{forward_both.3} parent=0 // pred_check_branch
    %877 = sbr.rel (0) target = $region49
  $region48: #{forward_both.3} parent=0 // pred_region
    _
  $region49: #{forward_both.3} parent=0 // pred_fallthru
    _
  // Predicated region
  $region50: #{forward_both.3} parent=0 // pred_check
    _
  $region51: #{forward_both.3} parent=0 // pred_check_branch
    %879 = sbr.rel (0) target = $region53
  $region52: #{forward_both.3} parent=0 // pred_region
    _
  $region53: #{forward_both.3} parent=0 // pred_fallthru
    _
  // Predicated region
  $region54: #{forward_both.3} parent=0 // pred_check
    _
  $region55: #{forward_both.3} parent=0 // pred_check_branch
    %881 = sbr.rel (0) target = $region57
  $region56: #{forward_both.3} parent=0 // pred_region
    _
  $region57: #{forward_both.3} parent=0 // pred_fallthru
    _
  // Predicated region
  $region58: #{forward_both.3} parent=0 // pred_check
    _
  $region59: #{forward_both.3} parent=0 // pred_check_branch
    %883 = sbr.rel (0) target = $region61
  $region60: #{forward_both.3} parent=0 // pred_region
    _
  $region61: #{forward_both.3} parent=0 // pred_fallthru
    _

</llo_original>
